<compile_context>
chip_gen: v7x
topology: tpu7x:2x2x1
jax: 0.10.0
libtpu: 0.0.40
codegen_flags: <defaults>
</compile_context>

<pallas_src>
import functools

import jax
import jax.numpy as jnp
import numpy as np
from jax import lax
from jax.experimental import pallas as pl
from jax.experimental.pallas import tpu as pltpu

BN_EPS = 1e-5


# ----------------------------------------------------------------------------
# One-time probe of pltpu.roll's shift convention (cached; call outside jit).
# Returns the sign to multiply a logical displacement s (out[p] = in[p+s]) by
# to obtain the `shift` argument of pltpu.roll.
# ----------------------------------------------------------------------------
@functools.lru_cache(maxsize=1)
def _roll_shift_sign():
    def k(x_ref, o_ref):
        o_ref[...] = pltpu.roll(x_ref[...], shift=1, axis=1)

    x = jnp.tile(jnp.arange(256, dtype=jnp.float32)[None, :], (8, 1))
    y = pl.pallas_call(
        k, out_shape=jax.ShapeDtypeStruct((8, 256), jnp.float32))(x)
    # jnp.roll semantics => y[:, 1] == x[:, 0] == 0  =>  shift = -s.
    return -1 if int(y[0, 1]) == 0 else 1


# ----------------------------------------------------------------------------
# Pallas kernel: full forward pass for one image (grid iterates the batch).
# ----------------------------------------------------------------------------
def _aug_resnet_kernel(x_ref, w0_ref, wres_ref, bres_ref, wf_ref, o_ref,
                       *, n_res_layers, H, W, roll_sign):
    HW = H * W
    taps = [(dh, dw) for dh in (-1, 0, 1) for dw in (-1, 0, 1)]

    # Per-tap validity masks, computed once per grid step and hoisted out of
    # the conv loops.  Lane position p maps to pixel (p // W, p % W).
    pos = lax.broadcasted_iota(jnp.int32, (1, HW), 1)
    row = pos // W
    col = pos - row * W
    masks, shifts = [], []
    for dh, dw in taps:
        valid = ((row + dh >= 0) & (row + dh < H) &
                 (col + dw >= 0) & (col + dw < W))
        masks.append(valid)
        shifts.append((roll_sign * (dh * W + dw)) % HW)

    def conv3x3(act, w_ref, w_base):
        """act: (Cin, HW) f32.  w_ref[w_base + tap]: (Cout, Cin) bf16."""
        acc = None
        for tap, (dh, dw) in enumerate(taps):
            if dh == 0 and dw == 0:
                v = act                                   # center tap: no shift
            else:
                v = jnp.where(masks[tap],
                              pltpu.roll(act, shift=shifts[tap], axis=1),
                              0.0)
            term = jnp.dot(w_ref[w_base + tap], v.astype(jnp.bfloat16),
                           preferred_element_type=jnp.float32)
            acc = term if acc is None else acc + term     # init with 1st tap
        return acc                                        # (Cout, HW) f32

    # ---- initial 3x3 conv (pad=1, no bias) + LeakyReLU(0.2) -----------------
    h = conv3x3(x_ref[0], w0_ref, 0)                      # (ndf, HW)
    h = jnp.where(h > 0, h, 0.2 * h)

    # ---- residual BasicBlocks (BN folded into scale/bias, inference) --------
    def res_block(t, h):
        identity = h
        y = conv3x3(h, wres_ref, t * 18)                  # conv1 (+BN1 scale)
        y = jnp.maximum(y + bres_ref[t * 2], 0.0)         # +BN1 bias, ReLU
        y = conv3x3(y, wres_ref, t * 18 + 9)              # conv2 (+BN2 scale)
        y = y + bres_ref[t * 2 + 1]                       # +BN2 bias
        return jnp.maximum(y + identity, 0.0)             # skip add + ReLU

    h = lax.fori_loop(0, n_res_layers, res_block, h)

    # ---- final 1x1 conv (no bias), lane-dense output ------------------------
    out = jnp.dot(wf_ref[...], h.astype(jnp.bfloat16),
                  preferred_element_type=jnp.float32)     # (n_out, HW)
    o_ref[0] = out.astype(o_ref.dtype)


# ----------------------------------------------------------------------------
# Wrapper (NCHW in / NCHW out, matching the PyTorch module).
# ----------------------------------------------------------------------------
def competition_aug_resnet_occupancy(x_nchw, packed_params, *, n_res_layers):
    w0, wres, bres, wf = packed_params
    B, nc, H, W = x_nchw.shape
    n_out = wf.shape[0]
    HW = H * W
    assert HW % 128 == 0, "i_size must be a multiple of 16"

    x = x_nchw.reshape(B, nc, HW).astype(jnp.float32)     # NCHW -> (B, C, HW)

    kernel = functools.partial(
        _aug_resnet_kernel, n_res_layers=n_res_layers, H=H, W=W,
        roll_sign=_roll_shift_sign())

    out = pl.pallas_call(
        kernel,
        out_shape=jax.ShapeDtypeStruct((B, n_out, HW), jnp.float32),
        grid_spec=pltpu.PrefetchScalarGridSpec(
            num_scalar_prefetch=0,
            grid=(B,),
            in_specs=[
                pl.BlockSpec((1, nc, HW), lambda b: (b, 0, 0)),
                pl.BlockSpec(w0.shape, lambda b: (0, 0, 0)),
                pl.BlockSpec(wres.shape, lambda b: (0, 0, 0)),
                pl.BlockSpec(bres.shape, lambda b: (0, 0, 0)),
                pl.BlockSpec(wf.shape, lambda b: (0, 0)),
            ],
            out_specs=pl.BlockSpec((1, n_out, HW), lambda b: (b, 0, 0)),
        ),
        compiler_params=pltpu.CompilerParams(
            dimension_semantics=("parallel",)),
    )(x, w0, wres, bres, wf)

    return out.reshape(B, n_out, H, W)                    # NCHW


# ----------------------------------------------------------------------------
# Deterministic parameter initialization (+ BN folding + kernel packing).
# ----------------------------------------------------------------------------
def init_params(key, nc, ndf, n_res_layers, n_out):
    n_keys = 2 + n_res_layers * 2 * 5
    keys = iter(jax.random.split(key, n_keys))

    raw = {}
    raw["w0"] = 0.1 * jax.random.normal(next(keys), (3, 3, nc, ndf), jnp.float32)
    raw["blocks"] = []
    for _ in range(n_res_layers):
        blk = {}
        for j in (1, 2):
            blk[f"w{j}"] = 0.1 * jax.random.normal(next(keys), (3, 3, ndf, ndf),
                                                   jnp.float32)
            blk[f"g{j}"] = 1.0 + 0.1 * jax.random.normal(next(keys), (ndf,),
                                                         jnp.float32)
            blk[f"b{j}"] = 0.1 * jax.random.normal(next(keys), (ndf,), jnp.float32)
            blk[f"m{j}"] = 0.05 * jax.random.normal(next(keys), (ndf,), jnp.float32)
            blk[f"v{j}"] = 0.5 + jnp.abs(
                jax.random.normal(next(keys), (ndf,), jnp.float32))
        raw["blocks"].append(blk)
    raw["wf"] = 0.1 * jax.random.normal(next(keys), (ndf, n_out), jnp.float32)

    # ---- fold BN (inference mode) and pack for the kernel --------------------
    def hwio_to_taps(w):                       # (3,3,I,O) -> (9, O, I)
        return jnp.transpose(w, (0, 1, 3, 2)).reshape(9, w.shape[3], w.shape[2])

    w0 = hwio_to_taps(raw["w0"]).astype(jnp.bfloat16)            # (9, ndf, nc)
    wres_list, bres_list = [], []
    for blk in raw["blocks"]:
        for j in (1, 2):
            scale = blk[f"g{j}"] / jnp.sqrt(blk[f"v{j}"] + BN_EPS)    # (ndf,)
            bias = blk[f"b{j}"] - blk[f"m{j}"] * scale                # (ndf,)
            w_folded = blk[f"w{j}"] * scale[None, None, None, :]      # HWIO
            wres_list.append(hwio_to_taps(w_folded))
            bres_list.append(bias.reshape(ndf, 1))
    wres = jnp.concatenate(wres_list, axis=0).astype(jnp.bfloat16)  # (n*2*9,ndf,ndf)
    bres = jnp.stack(bres_list, axis=0).astype(jnp.float32)         # (n*2, ndf, 1)
    wf = raw["wf"].T.astype(jnp.bfloat16)                           # (n_out, ndf)

    return raw, (w0, wres, bres, wf)


# ----------------------------------------------------------------------------
# Pure-JAX reference (uses the *raw* params with explicit BN), f32 throughout.
# ----------------------------------------------------------------------------
def reference_forward(x_nchw, raw):
    x = jnp.transpose(x_nchw, (0, 2, 3, 1)).astype(jnp.float32)     # NHWC

    def conv(x, w, pad):
        return lax.conv_general_dilated(
            x, w, (1, 1), [(pad, pad), (pad, pad)],
            dimension_numbers=("NHWC", "HWIO", "NHWC"))

    def bn(x, g, b, m, v):
        return (x - m) / jnp.sqrt(v + BN_EPS) * g + b

    h = conv(x, raw["w0"], 1)
    h = jnp.where(h > 0, h, 0.2 * h)
    for blk in raw["blocks"]:
        idn = h
        y = conv(h, blk["w1"], 1)
        y = jnp.maximum(bn(y, blk["g1"], blk["b1"], blk["m1"], blk["v1"]), 0.0)
        y = conv(y, blk["w2"], 1)
        y = bn(y, blk["g2"], blk["b2"], blk["m2"], blk["v2"])
        h = jnp.maximum(y + idn, 0.0)
    out = conv(h, raw["wf"][None, None, :, :], 0)
    return jnp.transpose(out, (0, 3, 1, 2))                         # NCHW


# ----------------------------------------------------------------------------
if __name__ == "__main__":
    # Small shapes consistent with the module: i_size multiple of 16.
    B, nc, i_size = 2, 4, 16
    ndf, n_res_layers, n_out = 32, 2, 1

    root = jax.random.PRNGKey(0)
    k_x, k_p = jax.random.split(root)

    x = jax.random.normal(k_x, (B, nc, i_size, i_size), jnp.float32)  # NCHW
    raw, packed = init_params(k_p, nc, ndf, n_res_layers, n_out)

    out = competition_aug_resnet_occupancy(x, packed, n_res_layers=n_res_layers)
    out = jax.block_until_ready(out)

    ref = jax.block_until_ready(reference_forward(x, raw))

    assert out.shape == (B, n_out, i_size, i_size), out.shape
    # Tolerance accounts for bf16 matmul operands (f32 accumulation).
    np.testing.assert_allclose(np.asarray(out), np.asarray(ref),
                               rtol=3e-2, atol=3e-2)
    print("KERNEL_OK")
</pallas_src>

<mosaic_0001>
module attributes {stable_mosaic.version = 11 : i64} {
  func.func @k(%arg0: memref<8x256xf32, #tpu.memory_space<vmem>>, %arg1: memref<8x256xf32, #tpu.memory_space<vmem>>) attributes {dimension_semantics = [], scalar_prefetch = 0 : i64, scratch_operands = 0 : i64, tpu.core_type = #tpu.core_type<tc>} {
    %c0 = arith.constant 0 : index
    %c0_0 = arith.constant 0 : index
    %0 = vector.load %arg0[%c0, %c0_0] : memref<8x256xf32, #tpu.memory_space<vmem>>, vector<8x256xf32>
    %c1_i32 = arith.constant 1 : i32
    %1 = tpu.dynamic_rotate %0 by %c1_i32 dim 1 : vector<8x256xf32>, i32 -> vector<8x256xf32>
    %c0_1 = arith.constant 0 : index
    %c0_2 = arith.constant 0 : index
    %2 = vector.load %arg1[%c0_1, %c0_2] : memref<8x256xf32, #tpu.memory_space<vmem>>, vector<8x256xf32>
    tpu.vector_store %arg1[%c0_1, %c0_2], %1 {strides = array<i32>} : memref<8x256xf32, #tpu.memory_space<vmem>>, vector<8x256xf32>,
    return
  }
}

</mosaic_0001>

<llo_original>
// kernel: tpu_custom_call.1
$region0: #{tpu_custom_call.1}
  #allocation0 [shape = 'u32[]', space=smem, size = 0x4, offset = 0x4, fixed_abs, tag = 'smem constant byte address 0x4 - core index']
  #allocation1 [shape = 'u32[144,128]{1,0:T(1,128)}', space=vmem, size = 0x12000, scoped, tag = 'internal scratch']
  %s0 = inlined_call_operand.hbm [shape: f32[8,256], index: 0, kind: input, shape index: {}]
  %s1 = inlined_call_operand.hbm [shape: f32[8,256], index: 1, kind: output, shape index: {}]
  %s2 = sld [smem:[#allocation0]]
  $region18: #{tpu_custom_call.1} parent=0
    _
  %s4 = ssub.s32 1, %s2
  %s5 = scalar_select 0, %s4, %s2
  $region1: #{tpu_custom_call.1} parent=0
    #allocation2 [shape = 'u8[8192]{0}', space=vmem, size = 0x2000, scoped, tag = 'input window, operand 0, single buffered']
    #allocation3 [shape = 's32[1]{0}', space=sflag, size = 0x4, scoped, tag = 'scoped memory for tpu_custom_call.1']
    #allocation4 [shape = 's32[1]{0}', space=sflag, size = 0x4, scoped, tag = 'scoped memory for tpu_custom_call.1']
    #allocation5 [shape = 'u8[8192]{0}', space=vmem, size = 0x2000, scoped, tag = 'output window, operand 0, single buffered']
    %6 = vsyncpa [#allocation3], 0
    %7 = vsyncpa [#allocation4], 0
    // Predicated region
    $region2: #{tpu_custom_call.1} parent=1 // pred_check
      _
    $region3: #{tpu_custom_call.1} parent=1 // pred_check_branch
      %9 = sbr.rel (0) target = $region5
    $region4: #{tpu_custom_call.1} parent=1 // pred_region
      %s11 = ssub.s32 256, 256
      %12 = vsyncadd [#allocation3], %s11
      %s14 = sshll.u32 [#allocation2], 4
      %s15 = int_to_ptr.vmem [resolvable:$true] %s14
      %17 = dma.hbm_to_vmem [thread:$0]  %s0, 256, %s15, [#allocation3]
    $region5: #{tpu_custom_call.1} parent=1 // pred_fallthru
      _
    // Predicated region
    $region6: #{tpu_custom_call.1} parent=1 // pred_check
      _
    $region7: #{tpu_custom_call.1} parent=1 // pred_check_branch
      %19 = sbr.rel (0) target = $region9
    $region8: #{tpu_custom_call.1} parent=1 // pred_region
      %20 = dma.done [#allocation3], 256
    $region9: #{tpu_custom_call.1} parent=1 // pred_fallthru
      _
    %v21 = vld [vmem:[#allocation2] sm:$0xff]
    %v22 = vld [vmem:[#allocation2 + $0x8] sm:$0xff]
    %23 = vrot.lane.b32.xlu0 %v21, 1
    %v24 = vpop.permute.xlu0 %23
    %25 = vrot.lane.b32.xlu0 %v22, 1
    %v26 = vpop.permute.xlu0 %25
    %v27 = vlaneseq
    %v28 = vand.u32 %v27, 127
    %vm29 = vcmp.lt.s32.totalorder %v28, 1
    %v30 = vsel %vm29, %v24, %v26
    %v31 = vsel %vm29, %v26, %v24
    %32 = vst [vmem:[#allocation5] sm:$0xff] %v31
    %33 = vst [vmem:[#allocation5 + $0x8] sm:$0xff] %v30
    // Predicated region
    $region10: #{tpu_custom_call.1} parent=1 // pred_check
      _
    $region11: #{tpu_custom_call.1} parent=1 // pred_check_branch
      %35 = sbr.rel (0) target = $region13
    $region12: #{tpu_custom_call.1} parent=1 // pred_region
      %s37 = ssub.s32 256, 256
      %38 = vsyncadd [#allocation4], %s37
      %s40 = sshll.u32 [#allocation5], 4
      %s41 = int_to_ptr.vmem [resolvable:$true] %s40
      %43 = dma.vmem_to_hbm [thread:$0]  %s41, 256, %s1, [#allocation4]
    $region13: #{tpu_custom_call.1} parent=1 // pred_fallthru
      _
    // Predicated region
    $region14: #{tpu_custom_call.1} parent=1 // pred_check
      _
    $region15: #{tpu_custom_call.1} parent=1 // pred_check_branch
      %45 = sbr.rel (0) target = $region17
    $region16: #{tpu_custom_call.1} parent=1 // pred_region
      %46 = dma.done [#allocation4], 256
    $region17: #{tpu_custom_call.1} parent=1 // pred_fallthru
      _
    %47 = vsyncpa [#allocation3], 1
    %48 = vsyncpa [#allocation4], 1

</llo_original>
